<compile_context>
chip_gen: v7x
topology: tpu7x:2x2x1
jax: 0.10.0
libtpu: 0.0.40
codegen_flags: <defaults>
</compile_context>

<pallas_src>
import functools

import jax
import jax.numpy as jnp
from jax import lax
from jax.experimental import pallas as pl
from jax.experimental.pallas import tpu as pltpu


def self_attn_kernel(x_ref, w_ref, b_ref, gamma_ref, o_ref, *, Cqp):
    """Per-batch-element body.

    x_ref:     (C, L)            f32   current batch element (batch dim squeezed)
    w_ref:     (2*Cqp + C, C)    bf16  fused [wq; wk; wv] (resident across grid)
    b_ref:     (2*Cqp + C, 1)    f32   fused bias
    gamma_ref: (1, 1)            f32   scalar in SMEM
    o_ref:     (C, L)            f32   output block for this batch element
    """
    x = x_ref[...]                                                    # (C, L) f32
    x_bf = x.astype(jnp.bfloat16)

    # Fused q/k/v projection: one bf16 MXU matmul, f32 accumulation, one bias add.
    qkv = jnp.dot(w_ref[...], x_bf,
                  preferred_element_type=jnp.float32) + b_ref[...]   # (2Cqp+C, L) f32

    q = qkv[:Cqp].astype(jnp.bfloat16)                                # (Cqp, L)
    k = qkv[Cqp:2 * Cqp].astype(jnp.bfloat16)                         # (Cqp, L)
    v = qkv[2 * Cqp:].astype(jnp.bfloat16)                            # (C,   L)

    # energy[i, j] = sum_c q[c, i] * k[c, j]   (MXU trans_a path, no vxpose)
    energy = lax.dot_general(q, k, (((0,), (0,)), ((), ())),
                             preferred_element_type=jnp.float32)      # (L, L) f32

    # Softmax over the last axis; max/sum stay f32, divide goes to the EUP slot.
    energy = energy - jnp.max(energy, axis=-1, keepdims=True)
    p = jnp.exp(energy)
    attn = (p * pl.reciprocal(jnp.sum(p, axis=-1, keepdims=True), approx=True)
            ).astype(jnp.bfloat16)                                    # (L, L) bf16

    # out[c, i] = sum_j v[c, j] * attn[i, j]   (MXU trans_b path, no vxpose)
    out = lax.dot_general(v, attn, (((1,), (1,)), ((), ())),
                          preferred_element_type=jnp.float32)         # (C, L) f32

    gamma = gamma_ref[0, 0]                                           # scalar (SMEM)
    o_ref[...] = (gamma * out + x).astype(o_ref.dtype)                # one unmasked store


def _vmem_limit_bytes(C, L, Cqp):
    f32, bf16 = 4, 2
    rows = 2 * Cqp + C
    per_step = (
        2 * C * L * f32          # x block in + out block
        + rows * C * bf16        # fused W (resident)
        + rows * 1 * f32         # fused bias
        + rows * L * f32         # qkv
        + 2 * L * L * f32        # energy + attn temporaries
        + C * L * f32            # attention output
    )
    # 2x for double buffering of the grid-varying blocks, 4x headroom; clamp so
    # the same limit is valid on v5e/v6e (128 MiB phys) and v7x (64 MiB phys).
    return int(min(max(per_step * 8, 4 << 20), 48 << 20))


def self_attention(x, wq, bq, wk, bk, wv, bv, gamma):
    B, C, L = x.shape
    Cq = wq.shape[0]

    # Zero-pad q/k projection rows to a multiple of 16 (bf16 sublane pack) so
    # the in-kernel qkv slices stay sublane-aligned. Zero rows + zero bias give
    # q/k channels that are identically zero and contribute nothing to energy.
    pad = (-Cq) % 16
    Cqp = Cq + pad
    wq_p = jnp.pad(wq, ((0, pad), (0, 0)))
    wk_p = jnp.pad(wk, ((0, pad), (0, 0)))
    bq_p = jnp.pad(bq, ((0, pad), (0, 0)))
    bk_p = jnp.pad(bk, ((0, pad), (0, 0)))

    # Fuse the three 1x1-conv weights / biases; W goes to bf16 (MXU operand),
    # bias stays f32 (added to the f32 accumulation).
    w = jnp.concatenate([wq_p, wk_p, wv], axis=0).astype(jnp.bfloat16)  # (2Cqp+C, C)
    b = jnp.concatenate([bq_p, bk_p, bv], axis=0)                       # (2Cqp+C, 1)

    kernel = functools.partial(self_attn_kernel, Cqp=Cqp)

    return pl.pallas_call(
        kernel,
        out_shape=jax.ShapeDtypeStruct((B, C, L), x.dtype),
        grid=(B,),
        in_specs=[
            # x: one (C, L) lane-dense slab per grid step (batch dim squeezed).
            pl.BlockSpec((None, C, L), lambda bi: (bi, 0, 0)),
            # Fused W / bias: constant index_map -> resident in VMEM across steps.
            pl.BlockSpec(w.shape, lambda bi: (0, 0)),
            pl.BlockSpec(b.shape, lambda bi: (0, 0)),
            # gamma scalar lives in SMEM.
            pl.BlockSpec(memory_space=pltpu.MemorySpace.SMEM),
        ],
        out_specs=pl.BlockSpec((None, C, L), lambda bi: (bi, 0, 0)),
        compiler_params=pltpu.CompilerParams(
            dimension_semantics=("parallel",),
            vmem_limit_bytes=_vmem_limit_bytes(C, L, Cqp),
        ),
    )(x, w, b, gamma)


def self_attention_ref(x, wq, bq, wk, bk, wv, bv, gamma):
    # Pure-JAX f32 reference matching the PyTorch forward.
    q = jnp.einsum('oc,bcl->bol', wq, x) + bq[None]
    k = jnp.einsum('oc,bcl->bol', wk, x) + bk[None]
    v = jnp.einsum('oc,bcl->bol', wv, x) + bv[None]
    energy = jnp.einsum('bci,bcj->bij', q, k)
    attn = jax.nn.softmax(energy, axis=-1)
    out = jnp.einsum('bcj,bij->bci', v, attn)
    return gamma * out + x


if __name__ == "__main__":
    B, C, L = 2, 32, 16          # in_dim=32 -> q/k channels = in_dim // 8 = 4
    Cq = C // 8

    key = jax.random.PRNGKey(0)
    kx, kwq, kbq, kwk, kbk, kwv, kbv = jax.random.split(key, 7)

    x = jax.random.normal(kx, (B, C, L), dtype=jnp.float32)

    # Deterministic synthetic parameters (Conv1d k=1 weights squeezed to 2D).
    wq = jax.random.normal(kwq, (Cq, C), dtype=jnp.float32) * 0.1
    bq = jax.random.normal(kbq, (Cq, 1), dtype=jnp.float32) * 0.1
    wk = jax.random.normal(kwk, (Cq, C), dtype=jnp.float32) * 0.1
    bk = jax.random.normal(kbk, (Cq, 1), dtype=jnp.float32) * 0.1
    wv = jax.random.normal(kwv, (C, C), dtype=jnp.float32) * 0.1
    bv = jax.random.normal(kbv, (C, 1), dtype=jnp.float32) * 0.1
    # PyTorch inits gamma to 0 (identity output); use 0.5 so the attention
    # path is actually exercised / verified.
    gamma = jnp.full((1, 1), 0.5, dtype=jnp.float32)

    y = self_attention(x, wq, bq, wk, bk, wv, bv, gamma)
    y = jax.block_until_ready(y)

    y_ref = self_attention_ref(x, wq, bq, wk, bk, wv, bv, gamma)
    assert y.shape == (B, C, L)
    # Tolerance accounts for bf16 MXU operands (f32 accumulation) and the
    # approximate EUP reciprocal in the softmax normalization.
    assert jnp.allclose(y, y_ref, atol=2e-2, rtol=2e-2), "mismatch vs reference"

    print("KERNEL_OK")
</pallas_src>

<mosaic_0001>
module attributes {stable_mosaic.version = 11 : i64} {
  func.func @self_attn_kernel(%arg0: i32, %arg1: memref<1x32x16xf32, #tpu.memory_space<vmem>>, %arg2: memref<64x32xbf16, #tpu.memory_space<vmem>>, %arg3: memref<64x1xf32, #tpu.memory_space<vmem>>, %arg4: memref<1x1xf32, #tpu.memory_space<smem>>, %arg5: memref<1x32x16xf32, #tpu.memory_space<vmem>>) attributes {dimension_semantics = [#tpu.dimension_semantics<parallel>], iteration_bounds = array<i64: 2>, scalar_prefetch = 0 : i64, scratch_operands = 0 : i64, tpu.core_type = #tpu.core_type<tc>, window_params = [{transform_indices = @transform_0, window_bounds = array<i64: 1, 32, 16>}, {pipeline_mode = #tpu.pipeline_mode<synchronous>, transform_indices = @transform_1, window_bounds = array<i64: 64, 32>}, {pipeline_mode = #tpu.pipeline_mode<synchronous>, transform_indices = @transform_2, window_bounds = array<i64: 64, 1>}, {transform_indices = @transform_3, window_bounds = array<i64: 1, 1>}, {transform_indices = @transform_4, window_bounds = array<i64: 1, 32, 16>}]} {
    %c0 = arith.constant 0 : index
    %c0_0 = arith.constant 0 : index
    %c0_1 = arith.constant 0 : index
    %0 = vector.load %arg1[%c0, %c0_0, %c0_1] : memref<1x32x16xf32, #tpu.memory_space<vmem>>, vector<1x32x16xf32>
    %1 = vector.shape_cast %0 : vector<1x32x16xf32> to vector<32x16xf32>
    %2 = arith.truncf %1 : vector<32x16xf32> to vector<32x16xbf16>
    %c0_2 = arith.constant 0 : index
    %c0_3 = arith.constant 0 : index
    %3 = vector.load %arg2[%c0_2, %c0_3] : memref<64x32xbf16, #tpu.memory_space<vmem>>, vector<64x32xbf16>
    %cst = arith.constant dense<0.000000e+00> : vector<64x16xf32>
    %4 = tpu.matmul %3, %2, %cst {dimension_numbers = #tpu.dot_dimension_numbers<[1], [0], [0], [1], [0, 0, 1, 1], [], []>} : vector<64x32xbf16>, vector<32x16xbf16>, vector<64x16xf32> -> vector<64x16xf32>
    %c0_4 = arith.constant 0 : index
    %c0_5 = arith.constant 0 : index
    %5 = vector.load %arg3[%c0_4, %c0_5] : memref<64x1xf32, #tpu.memory_space<vmem>>, vector<64x1xf32>
    %6 = vector.broadcast %5 : vector<64x1xf32> to vector<64x16xf32>
    %7 = arith.addf %4, %6 : vector<64x16xf32>
    %8 = vector.extract_strided_slice %7 {offsets = [0, 0], sizes = [16, 16], strides = [1, 1]} : vector<64x16xf32> to vector<16x16xf32>
    %9 = arith.truncf %8 : vector<16x16xf32> to vector<16x16xbf16>
    %10 = vector.extract_strided_slice %7 {offsets = [16, 0], sizes = [16, 16], strides = [1, 1]} : vector<64x16xf32> to vector<16x16xf32>
    %11 = arith.truncf %10 : vector<16x16xf32> to vector<16x16xbf16>
    %12 = vector.extract_strided_slice %7 {offsets = [32, 0], sizes = [32, 16], strides = [1, 1]} : vector<64x16xf32> to vector<32x16xf32>
    %13 = arith.truncf %12 : vector<32x16xf32> to vector<32x16xbf16>
    %cst_6 = arith.constant dense<0.000000e+00> : vector<16x16xf32>
    %14 = tpu.matmul %9, %11, %cst_6 {dimension_numbers = #tpu.dot_dimension_numbers<[0], [0], [1], [1], [0, 1, 1, 1], [], []>} : vector<16x16xbf16>, vector<16x16xbf16>, vector<16x16xf32> -> vector<16x16xf32>
    %cst_7 = arith.constant dense<0xFF800000> : vector<16xf32>
    %15 = vector.multi_reduction <maximumf>, %14, %cst_7 [1] : vector<16x16xf32> to vector<16xf32>
    %16 = vector.shape_cast %15 : vector<16xf32> to vector<16x1xf32>
    %17 = vector.broadcast %16 : vector<16x1xf32> to vector<16x16xf32>
    %18 = arith.subf %14, %17 : vector<16x16xf32>
    %19 = math.exp %18 : vector<16x16xf32>
    %cst_8 = arith.constant dense<0.000000e+00> : vector<16xf32>
    %20 = vector.multi_reduction <add>, %19, %cst_8 [1] : vector<16x16xf32> to vector<16xf32>
    %21 = vector.shape_cast %20 : vector<16xf32> to vector<16x1xf32>
    %22 = tpu.reciprocal %21 {approx = true} : vector<16x1xf32> -> vector<16x1xf32>
    %23 = vector.broadcast %22 : vector<16x1xf32> to vector<16x16xf32>
    %24 = arith.mulf %19, %23 : vector<16x16xf32>
    %25 = arith.truncf %24 : vector<16x16xf32> to vector<16x16xbf16>
    %cst_9 = arith.constant dense<0.000000e+00> : vector<32x16xf32>
    %26 = tpu.matmul %13, %25, %cst_9 {dimension_numbers = #tpu.dot_dimension_numbers<[1], [1], [0], [0], [0, 0, 1, 0], [], []>} : vector<32x16xbf16>, vector<16x16xbf16>, vector<32x16xf32> -> vector<32x16xf32>
    %c0_10 = arith.constant 0 : index
    %c0_11 = arith.constant 0 : index
    %27 = memref.load %arg4[%c0_10, %c0_11] : memref<1x1xf32, #tpu.memory_space<smem>>
    %28 = vector.broadcast %27 : f32 to vector<32x16xf32>
    %29 = arith.mulf %28, %26 : vector<32x16xf32>
    %30 = arith.addf %29, %1 : vector<32x16xf32>
    %c0_12 = arith.constant 0 : index
    %c0_13 = arith.constant 0 : index
    %c0_14 = arith.constant 0 : index
    %31 = vector.load %arg5[%c0_12, %c0_13, %c0_14] : memref<1x32x16xf32, #tpu.memory_space<vmem>>, vector<1x32x16xf32>
    %32 = vector.shape_cast %31 : vector<1x32x16xf32> to vector<32x16xf32>
    %33 = vector.shape_cast %30 : vector<32x16xf32> to vector<1x32x16xf32>
    tpu.vector_store %arg5[%c0_12, %c0_13, %c0_14], %33 {strides = array<i32>} : memref<1x32x16xf32, #tpu.memory_space<vmem>>, vector<1x32x16xf32>,
    return
  }
  func.func @transform_0(%arg0: i32) -> (i32, i32, i32) {
    %c0_i32 = arith.constant 0 : i32
    %c0_i32_0 = arith.constant 0 : i32
    %c0_i32_1 = arith.constant 0 : i32
    return %arg0, %c0_i32, %c0_i32_0 : i32, i32, i32
  }
  func.func @transform_1(%arg0: i32) -> (i32, i32) {
    %c0_i32 = arith.constant 0 : i32
    %c0_i32_0 = arith.constant 0 : i32
    %c0_i32_1 = arith.constant 0 : i32
    return %c0_i32, %c0_i32_0 : i32, i32
  }
  func.func @transform_2(%arg0: i32) -> (i32, i32) {
    %c0_i32 = arith.constant 0 : i32
    %c0_i32_0 = arith.constant 0 : i32
    %c0_i32_1 = arith.constant 0 : i32
    return %c0_i32, %c0_i32_0 : i32, i32
  }
  func.func @transform_3(%arg0: i32) -> (i32, i32) {
    %c0_i32 = arith.constant 0 : i32
    %c0_i32_0 = arith.constant 0 : i32
    %c0_i32_1 = arith.constant 0 : i32
    return %c0_i32, %c0_i32_0 : i32, i32
  }
  func.func @transform_4(%arg0: i32) -> (i32, i32, i32) {
    %c0_i32 = arith.constant 0 : i32
    %c0_i32_0 = arith.constant 0 : i32
    %c0_i32_1 = arith.constant 0 : i32
    return %arg0, %c0_i32, %c0_i32_0 : i32, i32, i32
  }
}

</mosaic_0001>

<llo_original>
// kernel: tpu_custom_call.1
$region0: #{tpu_custom_call.1}
  #allocation0 [shape = 'u32[]', space=smem, size = 0x4, offset = 0x4, fixed_abs, tag = 'smem constant byte address 0x4 - core index']
  #allocation1 [shape = 'u32[144,128]{1,0:T(1,128)}', space=vmem, size = 0x12000, scoped, tag = 'internal scratch']
  #allocation2 [shape = 'f32[1,1]{1,0:T(1,128)S(6)}', space=smem, size = 0x200, scoped, tag = 'scoped memory for tpu_custom_call.1']
  %s0 = inlined_call_operand.vmem [shape: f32[2,32,16], index: 0, kind: input, shape index: {}]
  %s1 = inlined_call_operand.vmem [shape: bf16[64,32], index: 1, kind: input, shape index: {}]
  %s2 = inlined_call_operand.vmem [shape: f32[64,1], index: 2, kind: input, shape index: {}]
  %s3 = inlined_call_operand.<no memory space> [shape: f32[1,1], index: 3, kind: input, shape index: {}]
  %s4 = inlined_call_operand.vmem [shape: f32[2,32,16], index: 4, kind: output, shape index: {}]
  %s5 = sld [smem:[#allocation0]]
  $region49: #{tpu_custom_call.1} parent=0
    _
  %s7 = ssub.s32 1, %s5
  %s8 = scalar_select 0, %s7, %s5
  %9 = sst [smem:[#allocation2]] %s3
  loop: start=0, step=1, limit=4
  $region2: #{tpu_custom_call.1} parent=0 // loop_pre_header
    _
  $region3: #{tpu_custom_call.1} parent=0 // loop_header
    %s11 = sphi 0, %s15
    %p12 = scmp.ge.s32.totalorder %s11, 4
    %s21 = sphi 0, %s23
    %s24 = sphi 0, %s21
    %s25 = sphi 0, %s24
    %s41 = sphi 0, %s25
    %s45 = sphi 0, %s45
    %s47 = sphi 0, %s45
    %s48 = sphi 0, %s47
    %s62 = sphi 0, %s48
    %s66 = sphi 0, %s66
    %s68 = sphi 0, %s66
    %s69 = sphi 0, %s68
    %s83 = sphi 0, %s69
    %s87 = sphi 0, %s87
    %s89 = sphi 0, %s87
    %s90 = sphi 0, %s89
    %s104 = sphi 0, %s90
    %s110 = sphi 0, %s112
    %s113 = sphi 0, %s110
    %s114 = sphi 0, %s113
    %s130 = sphi 0, %s114
  $region4: #{tpu_custom_call.1} parent=0 // loop_header_branch
    %14 = sbr.rel (%p12) target = $region8
  $region5: #{tpu_custom_call.1} parent=0 // loop_body
    %s16 = ssub.s32 %s11, 1
    %s17 = ssub.s32 %s11, 2
    %s18 = sadd.s32 %s11, 1
    %s19 = ssub.s32 %s11, %s18
    %p20 = scmp.eq.s32.totalorder %s19, 0
    %s22 = sadd.s32 %s21, 1
    %s23 = scalar_select %p20, %s21, %s22
    %p26 = pneg %p20
    %p27 = scmp.eq.s32.totalorder %s11, 1
    %p28 = por %p26, %p27
    %p29 = scmp.ne.s32.totalorder %s21, %s24
    %p30 = scmp.eq.s32.totalorder %s11, 0
    %p31 = por %p29, %p30
    %p32 = scmp.ne.s32.totalorder %s21, %s24
    %p33 = scmp.eq.s32.totalorder %s16, 1
    %p34 = por %p32, %p33
    %p35 = scmp.ne.s32.totalorder %s24, %s25
    %p36 = scmp.eq.s32.totalorder %s16, 0
    %p37 = por %p35, %p36
    %p38 = scmp.ne.s32.totalorder %s24, %s25
    %p39 = scmp.eq.s32.totalorder %s17, 1
    %p40 = por %p38, %p39
    %p42 = scmp.ne.s32.totalorder %s25, %s41
    %p43 = scmp.eq.s32.totalorder %s17, 0
    %p44 = por %p42, %p43
    %s46 = sadd.s32 %s45, 1
    %p49 = scmp.eq.s32.totalorder %s11, 1
    %p50 = scmp.ne.s32.totalorder %s45, %s47
    %p51 = scmp.eq.s32.totalorder %s11, 0
    %p52 = por %p50, %p51
    %p53 = scmp.ne.s32.totalorder %s45, %s47
    %p54 = scmp.eq.s32.totalorder %s16, 1
    %p55 = por %p53, %p54
    %p56 = scmp.ne.s32.totalorder %s47, %s48
    %p57 = scmp.eq.s32.totalorder %s16, 0
    %p58 = por %p56, %p57
    %p59 = scmp.ne.s32.totalorder %s47, %s48
    %p60 = scmp.eq.s32.totalorder %s17, 1
    %p61 = por %p59, %p60
    %p63 = scmp.ne.s32.totalorder %s48, %s62
    %p64 = scmp.eq.s32.totalorder %s17, 0
    %p65 = por %p63, %p64
    %s67 = sadd.s32 %s66, 1
    %p70 = scmp.eq.s32.totalorder %s11, 1
    %p71 = scmp.ne.s32.totalorder %s66, %s68
    %p72 = scmp.eq.s32.totalorder %s11, 0
    %p73 = por %p71, %p72
    %p74 = scmp.ne.s32.totalorder %s66, %s68
    %p75 = scmp.eq.s32.totalorder %s16, 1
    %p76 = por %p74, %p75
    %p77 = scmp.ne.s32.totalorder %s68, %s69
    %p78 = scmp.eq.s32.totalorder %s16, 0
    %p79 = por %p77, %p78
    %p80 = scmp.ne.s32.totalorder %s68, %s69
    %p81 = scmp.eq.s32.totalorder %s17, 1
    %p82 = por %p80, %p81
    %p84 = scmp.ne.s32.totalorder %s69, %s83
    %p85 = scmp.eq.s32.totalorder %s17, 0
    %p86 = por %p84, %p85
    %s88 = sadd.s32 %s87, 1
    %p91 = scmp.eq.s32.totalorder %s11, 1
    %p92 = scmp.ne.s32.totalorder %s87, %s89
    %p93 = scmp.eq.s32.totalorder %s11, 0
    %p94 = por %p92, %p93
    %p95 = scmp.ne.s32.totalorder %s87, %s89
    %p96 = scmp.eq.s32.totalorder %s16, 1
    %p97 = por %p95, %p96
    %p98 = scmp.ne.s32.totalorder %s89, %s90
    %p99 = scmp.eq.s32.totalorder %s16, 0
    %p100 = por %p98, %p99
    %p101 = scmp.ne.s32.totalorder %s89, %s90
    %p102 = scmp.eq.s32.totalorder %s17, 1
    %p103 = por %p101, %p102
    %p105 = scmp.ne.s32.totalorder %s90, %s104
    %p106 = scmp.eq.s32.totalorder %s17, 0
    %p107 = por %p105, %p106
    %s108 = ssub.s32 %s11, %s18
    %p109 = scmp.eq.s32.totalorder %s108, 0
    %s111 = sadd.s32 %s110, 1
    %s112 = scalar_select %p109, %s110, %s111
    %p115 = pneg %p109
    %p116 = scmp.eq.s32.totalorder %s11, 1
    %p117 = por %p115, %p116
    %p118 = scmp.ne.s32.totalorder %s110, %s113
    %p119 = scmp.eq.s32.totalorder %s11, 0
    %p120 = por %p118, %p119
    %p121 = scmp.ne.s32.totalorder %s110, %s113
    %p122 = scmp.eq.s32.totalorder %s16, 1
    %p123 = por %p121, %p122
    %p124 = scmp.ne.s32.totalorder %s113, %s114
    %p125 = scmp.eq.s32.totalorder %s16, 0
    %p126 = por %p124, %p125
    %p127 = scmp.ne.s32.totalorder %s113, %s114
    %p128 = scmp.eq.s32.totalorder %s17, 1
    %p129 = por %p127, %p128
    %p131 = scmp.ne.s32.totalorder %s114, %s130
    %p132 = scmp.eq.s32.totalorder %s17, 0
    %p133 = por %p131, %p132
    %p134 = scmp.le.s32.totalorder 1, %s11
    %p135 = scmp.lt.s32.totalorder %s11, 3
    %p136 = pnand %p134, %p135
    %p137 = pneg %p136
    // Predicated region
    $region9: #{tpu_custom_call.1} parent=5 // pred_check
      _
    $region10: #{tpu_custom_call.1} parent=5 // pred_check_branch
      %139 = sbr.rel (%p136) target = $region12
    $region11: #{tpu_custom_call.1} parent=5 // pred_region
      %s140 = ssub.s32 %s11, 1
      // Predicated region
      $region13: #{tpu_custom_call.1} parent=11 // pred_check
        %p141 = pneg %p58
      $region14: #{tpu_custom_call.1} parent=11 // pred_check_branch
        %143 = sbr.rel (%p141) target = $region16
      $region15: #{tpu_custom_call.1} parent=11 // pred_region
        _
      $region16: #{tpu_custom_call.1} parent=11 // pred_fallthru
        _
      // Predicated region
      $region17: #{tpu_custom_call.1} parent=11 // pred_check
        %p144 = pneg %p79
      $region18: #{tpu_custom_call.1} parent=11 // pred_check_branch
        %146 = sbr.rel (%p144) target = $region20
      $region19: #{tpu_custom_call.1} parent=11 // pred_region
        _
      $region20: #{tpu_custom_call.1} parent=11 // pred_fallthru
        _
      // Predicated region
      $region21: #{tpu_custom_call.1} parent=11 // pred_check
        %p147 = pneg %p100
      $region22: #{tpu_custom_call.1} parent=11 // pred_check_branch
        %149 = sbr.rel (%p147) target = $region24
      $region23: #{tpu_custom_call.1} parent=11 // pred_region
        _
      $region24: #{tpu_custom_call.1} parent=11 // pred_fallthru
        _
    $region12: #{tpu_custom_call.1} parent=5 // pred_fallthru
      _
    %p150 = scmp.lt.s32.totalorder %s11, 2
    // Predicated region
    $region25: #{tpu_custom_call.1} parent=5 // pred_check
      %p151 = pneg %p150
    $region26: #{tpu_custom_call.1} parent=5 // pred_check_branch
      %153 = sbr.rel (%p151) target = $region28
    $region27: #{tpu_custom_call.1} parent=5 // pred_region
      // Predicated region
      $region29: #{tpu_custom_call.1} parent=27 // pred_check
        %p154 = pneg %p31
      $region30: #{tpu_custom_call.1} parent=27 // pred_check_branch
        %156 = sbr.rel (%p154) target = $region32
      $region31: #{tpu_custom_call.1} parent=27 // pred_region
        %p157 = scmp.lt.s32.totalorder %s11, 1
        %s158 = scalar_select %p157, %s11, 1
        %s159 = smul.addr %s158, 4
        %s160 = smul.addr %s159, 8
        %s161 = scalar_lea.vmem %s0, %s160
      $region32: #{tpu_custom_call.1} parent=27 // pred_fallthru
        _
    $region28: #{tpu_custom_call.1} parent=5 // pred_fallthru
      _
    %p162 = scmp.le.s32.totalorder 1, %s11
    %p163 = scmp.lt.s32.totalorder %s11, 3
    %p164 = pnand %p162, %p163
    %p165 = pneg %p164
    // Predicated region
    $region33: #{tpu_custom_call.1} parent=5 // pred_check
      _
    $region34: #{tpu_custom_call.1} parent=5 // pred_check_branch
      %167 = sbr.rel (%p164) target = $region36
    $region35: #{tpu_custom_call.1} parent=5 // pred_region
      %s168 = ssub.s32 %s11, 1
      %p169 = scmp.lt.s32.totalorder %s16, 1
      %s170 = scalar_select %p169, %s16, 1
      %s171 = smul.addr %s170, 4
      %s172 = smul.addr %s171, 8
      %s173 = scalar_lea.vmem %s0, %s172
      %p174 = pneg %p37
      %p175 = pneg %p34
      %p176 = pneg %p58
      %p177 = pneg %p55
      %p178 = pneg %p79
      %p179 = pneg %p76
      %p180 = pneg %p100
      %p181 = pneg %p97
      %p182 = pneg %p126
      %p183 = pneg %p123
      %p184 = scmp.lt.s32.totalorder %s16, 1
      %s185 = scalar_select %p184, %s16, 1
      %s186 = smul.addr %s185, 4
      %s187 = smul.addr %s186, 8
      %s188 = scalar_lea.vmem %s4, %s187
      %p189 = scmp.lt.s32.totalorder %s16, 1
      %s190 = scalar_select %p189, %s16, 1
      %s191 = smul.addr %s190, 4
      %s192 = smul.addr %s191, 8
      %s193 = scalar_lea.vmem %s0, %s192
      %p194 = scmp.lt.s32.totalorder %s16, 1
      %s195 = scalar_select %p194, %s16, 1
      %s196 = smul.addr %s195, 4
      %s197 = smul.addr %s196, 8
      %s198 = scalar_lea.vmem %s4, %s197
      %v200 = vld [vmem:[%s193] sm:$0xff]
      %v201 = vld [vmem:[%s193 + $0x8] sm:$0xff]
      %v202 = vld [vmem:[%s193 + $0x10] sm:$0xff]
      %v203 = vld [vmem:[%s193 + $0x18] sm:$0xff]
      %v204 = vpack.c.bf16 %v201, %v200
      %v205 = vpack.c.bf16 %v203, %v202
      %v206 = vld [vmem:[%s1] sm:$0xf]
      %v207 = vld [vmem:[%s1 + $0x4] sm:$0xf]
      %v208 = vld [vmem:[%s1 + $0x8] sm:$0xf]
      %v209 = vld [vmem:[%s1 + $0xc] sm:$0xf]
      %v210 = vld [vmem:[%s1 + $0x10] sm:$0xf]
      %v211 = vld [vmem:[%s1 + $0x14] sm:$0xf]
      %v212 = vld [vmem:[%s1 + $0x18] sm:$0xf]
      %v213 = vld [vmem:[%s1 + $0x1c] sm:$0xf]
      %v214 = vld [vmem:[%s2] sm:$0xff]
      %v215 = vld [vmem:[%s2 + $0x8] sm:$0xff]
      %v216 = vld [vmem:[%s2 + $0x10] sm:$0xff]
      %v217 = vld [vmem:[%s2 + $0x18] sm:$0xff]
      %v218 = vld [vmem:[%s2 + $0x20] sm:$0xff]
      %v219 = vld [vmem:[%s2 + $0x28] sm:$0xff]
      %v220 = vld [vmem:[%s2 + $0x30] sm:$0xff]
      %v221 = vld [vmem:[%s2 + $0x38] sm:$0xff]
      %223 = vset.pattern.permute.xlu0 0
      %224 = vperm.xlu0 %223, %v214
      %v225 = vpop.permute.xlu0 %224
      %228 = vset.pattern.permute.xlu0 0
      %229 = vperm.xlu0 %228, %v215
      %v230 = vpop.permute.xlu0 %229
      %233 = vset.pattern.permute.xlu0 0
      %234 = vperm.xlu0 %233, %v216
      %v235 = vpop.permute.xlu0 %234
      %238 = vset.pattern.permute.xlu0 0
      %239 = vperm.xlu0 %238, %v217
      %v240 = vpop.permute.xlu0 %239
      %243 = vset.pattern.permute.xlu0 0
      %244 = vperm.xlu0 %243, %v218
      %v245 = vpop.permute.xlu0 %244
      %248 = vset.pattern.permute.xlu0 0
      %249 = vperm.xlu0 %248, %v219
      %v250 = vpop.permute.xlu0 %249
      %253 = vset.pattern.permute.xlu0 0
      %254 = vperm.xlu0 %253, %v220
      %v255 = vpop.permute.xlu0 %254
      %258 = vset.pattern.permute.xlu0 0
      %259 = vperm.xlu0 %258, %v221
      %v260 = vpop.permute.xlu0 %259
      %v270 = vunpack.c.l.b16 %v206
      %v271 = vunpack.c.l.b16 %v207
      %v272 = vunpack.c.l.b16 %v208
      %v273 = vunpack.c.l.b16 %v209
      %v274 = vunpack.c.l.b16 %v210
      %v275 = vunpack.c.l.b16 %v211
      %v276 = vunpack.c.l.b16 %v212
      %v277 = vunpack.c.l.b16 %v213
      %v278 = vpack.c.b16 %v271, %v270
      %v279 = vpack.c.b16 %v273, %v272
      %v280 = vpack.c.b16 %v275, %v274
      %v281 = vpack.c.b16 %v277, %v276
      %vm282 = vcmask 261120
      %v284 = vsel %vm282, %v278, 0
      %v287 = vsel %vm282, %v279, 0
      %v290 = vsel %vm282, %v280, 0
      %v293 = vsel %vm282, %v281, 0
      %295 = vmatprep.subr.bf16.mxu0 0
      %296 = vmatpush1.bf16.msra.mxu0 %v204
      %297 = vmatprep.subr.bf16.mxu0 0
      %298 = vmatpush1.bf16.msra.mxu0 %v205
      %299 = vmatprep.subr.bf16.mxu0 0
      %300 = vmatpush1.bf16.msra.mxu0 0
      %301 = vmatprep.subr.bf16.mxu0 0
      %302 = vmatpush1.bf16.msra.mxu0 0
      %303 = vmatprep.subr.bf16.mxu0 0
      %304 = vmatpush1.bf16.msra.mxu0 0
      %305 = vmatprep.subr.bf16.mxu0 0
      %306 = vmatpush1.bf16.msra.mxu0 0
      %307 = vmatprep.subr.bf16.mxu0 0
      %308 = vmatpush1.bf16.msra.mxu0 0
      %309 = vmatprep.subr.bf16.mxu0 0
      %310 = vmatpush1.bf16.msra.mxu0 0
      %311 = vmatprep.subr.bf16.mxu0 0
      %312 = vmatpush1.bf16.msra.mxu0 0
      %313 = vmatprep.subr.bf16.mxu0 0
      %314 = vmatpush1.bf16.msra.mxu0 0
      %315 = vmatprep.subr.bf16.mxu0 0
      %316 = vmatpush1.bf16.msra.mxu0 0
      %317 = vmatprep.subr.bf16.mxu0 0
      %318 = vmatpush1.bf16.msra.mxu0 0
      %319 = vmatprep.subr.bf16.mxu0 0
      %320 = vmatpush1.bf16.msra.mxu0 0
      %321 = vmatprep.subr.bf16.mxu0 0
      %322 = vmatpush1.bf16.msra.mxu0 0
      %323 = vmatprep.subr.bf16.mxu0 0
      %324 = vmatpush1.bf16.msra.mxu0 0
      %325 = vmatprep.subr.bf16.mxu0 0
      %326 = vmatpush1.bf16.msra.mxu0 0
      %327 = vmatprep.mubr.bf16.mxu0 0
      %328 = vmatmul.mubr.bf16.gmra.mrb[0].mxu0 %v284
      %v329 = vpop.f32.mrb[0].mxu0
      %v330 = vadd.f32 %v225, %v329
      %v331 = vpop.f32.mrb[0].mxu0
      %v332 = vpop.f32.mrb[0].mxu0
      %v333 = vadd.f32 %v230, %v332
      %v334 = vpop.f32.mrb[0].mxu0
      %335 = vmatprep.mubr.bf16.mxu0 0
      %336 = vmatmul.mubr.bf16.gmra.mrb[0].mxu0 %v287
      %v337 = vpop.f32.mrb[0].mxu0
      %v338 = vadd.f32 %v235, %v337
      %v339 = vpop.f32.mrb[0].mxu0
      %v340 = vpop.f32.mrb[0].mxu0
      %v341 = vadd.f32 %v240, %v340
      %v342 = vpop.f32.mrb[0].mxu0
      %343 = vmatprep.mubr.bf16.mxu0 0
      %344 = vmatmul.mubr.bf16.gmra.mrb[0].mxu0 %v290
      %v345 = vpop.f32.mrb[0].mxu0
      %v346 = vadd.f32 %v245, %v345
      %v347 = vpop.f32.mrb[0].mxu0
      %v348 = vpop.f32.mrb[0].mxu0
      %v349 = vadd.f32 %v250, %v348
      %v350 = vpop.f32.mrb[0].mxu0
      %351 = vmatprep.mubr.bf16.mxu0 0
      %352 = vmatmul.mubr.bf16.gmra.mrb[0].mxu0 %v293
      %v353 = vpop.f32.mrb[0].mxu0
      %v354 = vadd.f32 %v255, %v353
      %v355 = vpop.f32.mrb[0].mxu0
      %v356 = vpop.f32.mrb[0].mxu0
      %v357 = vadd.f32 %v260, %v356
      %v358 = vpop.f32.mrb[0].mxu0
      %359 = vdwg.mxu0
      %v360 = vpack.c.bf16 %v333, %v330
      %v361 = vpack.c.bf16 %v341, %v338
      %v362 = vpack.c.bf16 %v349, %v346
      %v363 = vpack.c.bf16 %v357, %v354
      %364 = vxpose.xlu0.c.b16.start [1/8] %v360, 128
      %365 = vxpose.xlu0.c.b16.cont [2/8] 0, 128
      %366 = vxpose.xlu0.c.b16.cont [3/8] 0, 128
      %367 = vxpose.xlu0.c.b16.cont [4/8] 0, 128
      %368 = vxpose.xlu0.c.b16.cont [5/8] 0, 128
      %369 = vxpose.xlu0.c.b16.cont [6/8] 0, 128
      %370 = vxpose.xlu0.c.b16.cont [7/8] 0, 128
      %371 = vxpose.xlu0.c.b16.end [8/8] 0, 128
      %v372 = vpop.trf.xlu0
      %v373 = vpop.trf.xlu0
      %v374 = vpop.trf.xlu0
      %v375 = vpop.trf.xlu0
      %v376 = vpop.trf.xlu0
      %v377 = vpop.trf.xlu0
      %v378 = vpop.trf.xlu0
      %v379 = vpop.trf.xlu0
      %vm380 = vcmask 130048
      %v382 = vsel %vm380, %v372, 0
      %384 = vmatprep.subr.bf16.mxu0 0
      %385 = vmatpush1.bf16.msra.mxu0 %v361
      %386 = vmatprep.subr.bf16.mxu0 0
      %387 = vmatpush1.bf16.msra.mxu0 0
      %388 = vmatprep.subr.bf16.mxu0 0
      %389 = vmatpush1.bf16.msra.mxu0 0
      %390 = vmatprep.subr.bf16.mxu0 0
      %391 = vmatpush1.bf16.msra.mxu0 0
      %392 = vmatprep.subr.bf16.mxu0 0
      %393 = vmatpush1.bf16.msra.mxu0 0
      %394 = vmatprep.subr.bf16.mxu0 0
      %395 = vmatpush1.bf16.msra.mxu0 0
      %396 = vmatprep.subr.bf16.mxu0 0
      %397 = vmatpush1.bf16.msra.mxu0 0
      %398 = vmatprep.subr.bf16.mxu0 0
      %399 = vmatpush1.bf16.msra.mxu0 0
      %400 = vmatprep.subr.bf16.mxu0 0
      %401 = vmatpush1.bf16.msra.mxu0 0
      %402 = vmatprep.subr.bf16.mxu0 0
      %403 = vmatpush1.bf16.msra.mxu0 0
      %404 = vmatprep.subr.bf16.mxu0 0
      %405 = vmatpush1.bf16.msra.mxu0 0
      %406 = vmatprep.subr.bf16.mxu0 0
      %407 = vmatpush1.bf16.msra.mxu0 0
      %408 = vmatprep.subr.bf16.mxu0 0
      %409 = vmatpush1.bf16.msra.mxu0 0
      %410 = vmatprep.subr.bf16.mxu0 0
      %411 = vmatpush1.bf16.msra.mxu0 0
      %412 = vmatprep.subr.bf16.mxu0 0
      %413 = vmatpush1.bf16.msra.mxu0 0
      %414 = vmatprep.subr.bf16.mxu0 0
      %415 = vmatpush1.bf16.msra.mxu0 0
      %416 = vmatprep.mubr.bf16.mxu0 0
      %417 = vmatmul.mubr.bf16.gmra.mrb[0].mxu0 %v382
      %v418 = vpop.f32.mrb[0].mxu0
      %v419 = vadd.f32 0.0, %v418
      %v420 = vpop.f32.mrb[0].mxu0
      %v421 = vpop.f32.mrb[0].mxu0
      %v422 = vadd.f32 0.0, %v421
      %v423 = vpop.f32.mrb[0].mxu0
      %424 = vdwg.mxu0
      %v425 = vsel %vm380, %v419, -inf
      %426 = vmax.xlane.f32.xlu0 %v425
      %v427 = vpop.xlane.xlu0 %426
      %v428 = vsel %vm380, %v422, -inf
      %429 = vmax.xlane.f32.xlu0 %v428
      %v430 = vpop.xlane.xlu0 %429
      %v431 = vsub.f32 %v419, %v427
      %v432 = vsub.f32 %v422, %v430
      %v433 = vmul.f32 %v431, 1.442695
      %v434 = vpow.pop %v433
      %v435 = vmul.f32 %v432, 1.442695
      %v436 = vpow.pop %v435
      %v437 = vsel %vm380, %v434, 0.0
      %438 = vadd.xlane.f32.xlu0 %v437
      %v439 = vpop.xlane.xlu0 %438
      %v440 = vsel %vm380, %v436, 0.0
      %441 = vadd.xlane.f32.xlu0 %v440
      %v442 = vpop.xlane.xlu0 %441
      %v443 = vrcp.pop %v439
      %v444 = vrcp.pop %v442
      %v445 = vmul.f32 %v434, %v443
      %v446 = vmul.f32 %v436, %v444
      %v447 = vpack.c.bf16 %v446, %v445
      %v449 = vsel %vm380, %v362, 0
      %v452 = vsel %vm380, %v363, 0
      %v455 = vsel %vm380, %v447, 0
      %457 = vmatprep.subr.bf16.mxu0 0
      %458 = vmatpush1.bf16.xpose.msra.mxu0 %v455
      %459 = vmatprep.subr.bf16.mxu0 0
      %460 = vmatpush1.bf16.xpose.msra.mxu0 0
      %461 = vmatprep.subr.bf16.mxu0 0
      %462 = vmatpush1.bf16.xpose.msra.mxu0 0
      %463 = vmatprep.subr.bf16.mxu0 0
      %464 = vmatpush1.bf16.xpose.msra.mxu0 0
      %465 = vmatprep.subr.bf16.mxu0 0
      %466 = vmatpush1.bf16.xpose.msra.mxu0 0
      %467 = vmatprep.subr.bf16.mxu0 0
      %468 = vmatpush1.bf16.xpose.msra.mxu0 0
      %469 = vmatprep.subr.bf16.mxu0 0
      %470 = vmatpush1.bf16.xpose.msra.mxu0 0
      %471 = vmatprep.subr.bf16.mxu0 0
      %472 = vmatpush1.bf16.xpose.msra.mxu0 0
      %473 = vmatprep.subr.bf16.mxu0 0
      %474 = vmatpush1.bf16.xpose.msra.mxu0 0
      %475 = vmatprep.subr.bf16.mxu0 0
      %476 = vmatpush1.bf16.xpose.msra.mxu0 0
      %477 = vmatprep.subr.bf16.mxu0 0
      %478 = vmatpush1.bf16.xpose.msra.mxu0 0
      %479 = vmatprep.subr.bf16.mxu0 0
      %480 = vmatpush1.bf16.xpose.msra.mxu0 0
      %481 = vmatprep.subr.bf16.mxu0 0
      %482 = vmatpush1.bf16.xpose.msra.mxu0 0
      %483 = vmatprep.subr.bf16.mxu0 0
      %484 = vmatpush1.bf16.xpose.msra.mxu0 0
      %485 = vmatprep.subr.bf16.mxu0 0
      %486 = vmatpush1.bf16.xpose.msra.mxu0 0
      %487 = vmatprep.subr.bf16.mxu0 0
      %488 = vmatpush1.bf16.xpose.msra.mxu0 0
      %489 = vmatprep.mubr.bf16.mxu0 0
      %490 = vmatmul.mubr.bf16.gmra.mrb[0].mxu0 %v449
      %v491 = vpop.f32.mrb[0].mxu0
      %v492 = vadd.f32 0.0, %v491
      %v493 = vpop.f32.mrb[0].mxu0
      %v494 = vpop.f32.mrb[0].mxu0
      %v495 = vadd.f32 0.0, %v494
      %v496 = vpop.f32.mrb[0].mxu0
      %497 = vmatprep.mubr.bf16.mxu0 0
      %498 = vmatmul.mubr.bf16.gmra.mrb[0].mxu0 %v452
      %v499 = vpop.f32.mrb[0].mxu0
      %v500 = vadd.f32 0.0, %v499
      %v501 = vpop.f32.mrb[0].mxu0
      %v502 = vpop.f32.mrb[0].mxu0
      %v503 = vadd.f32 0.0, %v502
      %v504 = vpop.f32.mrb[0].mxu0
      %505 = vdwg.mxu0
      %s506 = sld [smem:[#allocation2]]
      %v507 = vstv %s506
      %v508 = vmul.f32 %v507, %v492
      %v509 = vmul.f32 %v507, %v495
      %v510 = vmul.f32 %v507, %v500
      %v511 = vmul.f32 %v507, %v503
      %v512 = vadd.f32 %v508, %v200
      %v513 = vadd.f32 %v509, %v201
      %v514 = vadd.f32 %v510, %v202
      %v515 = vadd.f32 %v511, %v203
      %516 = vst.msk [vmem:[%s198] sm:$0xff] %vm380, %v512
      %517 = vst.msk [vmem:[%s198 + $0x8] sm:$0xff] %vm380, %v513
      %518 = vst.msk [vmem:[%s198 + $0x10] sm:$0xff] %vm380, %v514
      %519 = vst.msk [vmem:[%s198 + $0x18] sm:$0xff] %vm380, %v515
      %p520 = scmp.lt.s32.totalorder %s16, 1
      %s521 = scalar_select %p520, %s16, 1
      %s522 = smul.addr %s521, 4
      %s523 = smul.addr %s522, 8
      %s524 = scalar_lea.vmem %s4, %s523
      // Predicated region
      $region37: #{tpu_custom_call.1} parent=35 // pred_check
        %p525 = pneg %p123
      $region38: #{tpu_custom_call.1} parent=35 // pred_check_branch
        %527 = sbr.rel (%p525) target = $region40
      $region39: #{tpu_custom_call.1} parent=35 // pred_region
        _
      $region40: #{tpu_custom_call.1} parent=35 // pred_fallthru
        _
    $region36: #{tpu_custom_call.1} parent=5 // pred_fallthru
      _
    %p528 = scmp.le.s32.totalorder 2, %s11
    // Predicated region
    $region41: #{tpu_custom_call.1} parent=5 // pred_check
      %p529 = pneg %p528
    $region42: #{tpu_custom_call.1} parent=5 // pred_check_branch
      %531 = sbr.rel (%p529) target = $region44
    $region43: #{tpu_custom_call.1} parent=5 // pred_region
      %s532 = ssub.s32 %s11, 2
      // Predicated region
      $region45: #{tpu_custom_call.1} parent=43 // pred_check
        %p533 = pneg %p129
      $region46: #{tpu_custom_call.1} parent=43 // pred_check_branch
        %535 = sbr.rel (%p533) target = $region48
      $region47: #{tpu_custom_call.1} parent=43 // pred_region
        %p536 = scmp.lt.s32.totalorder %s17, 1
        %s537 = scalar_select %p536, %s17, 1
        %s538 = smul.addr %s537, 4
        %s539 = smul.addr %s538, 8
        %s540 = scalar_lea.vmem %s4, %s539
      $region48: #{tpu_custom_call.1} parent=43 // pred_fallthru
        _
    $region44: #{tpu_custom_call.1} parent=5 // pred_fallthru
      _
  $region6: #{tpu_custom_call.1} parent=0 // loop_footer
    %s15 = sadd.s32 1, %s11
  $region7: #{tpu_custom_call.1} parent=0 // loop_footer_branch
    %10 = sbr.rel target = $region3
  $region8: #{tpu_custom_call.1} parent=0 // loop_exit
    _

</llo_original>
